<compile_context>
chip_gen: v6e
topology: v6e:2x2x1
jax: 0.10.0
libtpu: 0.0.40
codegen_flags: <defaults>
</compile_context>

<pallas_src>
import jax
import jax.numpy as jnp
import numpy as np
from jax.experimental import pallas as pl
from jax.experimental.pallas import tpu as pltpu


def _cascade_parallel_sum_kernel(x_ref, w_ref, b_ref, o_ref, wsum_ref):
    """One grid step == one (tm, tn) output tile.

    Grid is (j: D_out//tn  [outer, parallel], i: N//tm  [inner, arbitrary]).

    x_ref    : (tm, D_in)     activation row tile (changes along i)
    w_ref    : (K, D_in, tn)  ALL K weight slabs for column tile j (invariant in i)
    b_ref    : (1, tn)        pre-summed bias slab for column tile j (invariant in i)
    o_ref    : (tm, tn)       output tile
    wsum_ref : (D_in, tn)     VMEM scratch holding sum_k W_k for column tile j
    """
    i = pl.program_id(1)  # inner row-tile index

    # Reduce the K parallel sub-module weights ONCE per column tile.  The
    # weight block index does not change along the inner axis, so its DMA is
    # skipped on subsequent steps and this VPU work is done only on i == 0.
    @pl.when(i == 0)
    def _():
        num_k = w_ref.shape[0]
        wsum_ref[...] = w_ref[0]
        for k in range(1, num_k):           # sequential adds: ~2 tiles live
            wsum_ref[...] += w_ref[k]

    # Single MXU matmul against the cached reduced weight tile.
    acc = jnp.dot(x_ref[...], wsum_ref[...], preferred_element_type=jnp.float32)
    o_ref[...] = (acc + b_ref[...]).astype(o_ref.dtype)


def _pick_tile(extent, candidates):
    """Largest candidate tile that exactly divides `extent`, else full extent."""
    for c in candidates:
        if c <= extent and extent % c == 0:
            return c
    return extent  # full-extent blocks are always layout-legal


def cascade_parallel_sum(x, weights, biases, *, tm=None, tn=None):
    """Fused forward pass of CascadeParallelSum over K linear sub-modules.

    x       : (N, D_in)        float32
    weights : (K, D_in, D_out) float32
    biases  : (K, D_out)       float32
    returns : (N, D_out) float32  ==  sum_k (x @ weights[k] + biases[k])
    """
    N, D_in = x.shape
    K, _, D_out = weights.shape

    # MXU-friendly tiles; collapse to a single grid step for small problems.
    if tm is None:
        tm = _pick_tile(N, (512, 256, 128, 64, 32, 16, 8))
    if tn is None:
        tn = _pick_tile(D_out, (512, 256, 128))

    # Bias reduction is trivially cheap -> do it once in the wrapper and drop
    # the (K, 1, tn) per-step input entirely.
    b_sum = jnp.sum(biases, axis=0, keepdims=True)  # (1, D_out)

    grid = (D_out // tn, N // tm)  # j outer (weights invariant on inner i)

    grid_spec = pltpu.PrefetchScalarGridSpec(
        num_scalar_prefetch=0,
        grid=grid,
        in_specs=[
            # Activation row tile: depends only on the inner index i.
            pl.BlockSpec((tm, D_in), lambda j, i: (i, 0)),
            # All K weight slabs for column tile j: invariant along inner axis
            # -> DMA'd from HBM exactly once per column tile.
            pl.BlockSpec((K, D_in, tn), lambda j, i: (0, 0, j)),
            # Pre-summed bias slab for column tile j.
            pl.BlockSpec((1, tn), lambda j, i: (0, j)),
        ],
        out_specs=pl.BlockSpec((tm, tn), lambda j, i: (i, j)),
        scratch_shapes=[pltpu.VMEM((D_in, tn), jnp.float32)],
    )

    # Double-buffered working set + reduced-weight scratch, with headroom,
    # capped at v7x's 64 MiB physical VMEM.
    itemsize = 4
    vmem_bytes = itemsize * (
        2 * K * D_in * tn      # weight block (double-buffered)
        + 2 * tm * D_in        # x block
        + 2 * tm * tn          # output block
        + 2 * tn               # bias block
        + D_in * tn            # w_sum scratch
    )
    vmem_limit = min(max(int(vmem_bytes * 1.25) + (2 << 20), 16 << 20), 64 << 20)

    return pl.pallas_call(
        _cascade_parallel_sum_kernel,
        out_shape=jax.ShapeDtypeStruct((N, D_out), jnp.float32),
        grid_spec=grid_spec,
        compiler_params=pltpu.CompilerParams(
            # Outer column axis is independent (megacore-shardable on v7x);
            # inner row axis is "arbitrary" so a weight-reuse run (and its
            # pl.when(i == 0) scratch init) is never split across cores.
            dimension_semantics=("parallel", "arbitrary"),
            vmem_limit_bytes=vmem_limit,
        ),
    )(x, weights, b_sum)


if __name__ == "__main__":
    # Shapes consistent with the module's forward (Batch with a single 'x'
    # tensor of shape (batch, features)); lane/sublane aligned, small enough
    # that the adaptive tiling collapses the whole op to ONE grid step.
    N, D_in, D_out, K = 256, 128, 256, 3

    key = jax.random.PRNGKey(0)
    kx, kw, kb = jax.random.split(key, 3)
    x = jax.random.normal(kx, (N, D_in), dtype=jnp.float32)
    # Deterministic parameter init for the K contained linear sub-modules.
    weights = jax.random.normal(kw, (K, D_in, D_out), dtype=jnp.float32) * 0.1
    biases = jax.random.normal(kb, (K, D_out), dtype=jnp.float32) * 0.1

    out = cascade_parallel_sum(x, weights, biases)
    out = jax.block_until_ready(out)

    # Pure-JAX reference of CascadeParallelSum.forward (Batch.sum of outputs).
    ref = sum(x @ weights[k] + biases[k][None, :] for k in range(K))
    np.testing.assert_allclose(np.asarray(out), np.asarray(ref),
                               rtol=1e-4, atol=1e-4)

    # TODO(synk): update_local / UpdateContext caching is training-time
    # bookkeeping (autograd graph surgery), not a forward compute path, so it
    # is not expressed as a kernel.
    print("KERNEL_OK")
</pallas_src>

<mosaic_0001>
module attributes {stable_mosaic.version = 11 : i64} {
  func.func @_cascade_parallel_sum_kernel(%arg0: i32, %arg1: i32, %arg2: memref<256x128xf32, #tpu.memory_space<vmem>>, %arg3: memref<3x128x256xf32, #tpu.memory_space<vmem>>, %arg4: memref<1x256xf32, #tpu.memory_space<vmem>>, %arg5: memref<256x256xf32, #tpu.memory_space<vmem>>, %arg6: memref<128x256xf32, #tpu.memory_space<vmem>>) attributes {dimension_semantics = [#tpu.dimension_semantics<parallel>, #tpu.dimension_semantics<arbitrary>], iteration_bounds = array<i64: 1, 1>, scalar_prefetch = 0 : i64, scratch_operands = 1 : i64, tpu.core_type = #tpu.core_type<tc>, window_params = [{transform_indices = @transform_0, window_bounds = array<i64: 256, 128>}, {transform_indices = @transform_1, window_bounds = array<i64: 3, 128, 256>}, {transform_indices = @transform_2, window_bounds = array<i64: 1, 256>}, {transform_indices = @transform_3, window_bounds = array<i64: 256, 256>}]} {
    %c0_i32 = arith.constant 0 : i32
    %0 = arith.cmpi eq, %arg1, %c0_i32 : i32
    %1 = arith.extui %0 : i1 to i32
    %c0_i32_0 = arith.constant 0 : i32
    %2 = arith.cmpi ne, %1, %c0_i32_0 : i32
    scf.if %2 {
      %c0_8 = arith.constant 0 : index
      %c0_9 = arith.constant 0 : index
      %c0_10 = arith.constant 0 : index
      %10 = vector.load %arg3[%c0_8, %c0_9, %c0_10] : memref<3x128x256xf32, #tpu.memory_space<vmem>>, vector<1x128x256xf32>
      %11 = vector.shape_cast %10 : vector<1x128x256xf32> to vector<128x256xf32>
      %c0_11 = arith.constant 0 : index
      %c0_12 = arith.constant 0 : index
      %12 = vector.load %arg6[%c0_11, %c0_12] : memref<128x256xf32, #tpu.memory_space<vmem>>, vector<128x256xf32>
      tpu.vector_store %arg6[%c0_11, %c0_12], %11 {strides = array<i32>} : memref<128x256xf32, #tpu.memory_space<vmem>>, vector<128x256xf32>,
      %c0_13 = arith.constant 0 : index
      %c0_14 = arith.constant 0 : index
      %13 = vector.load %arg6[%c0_13, %c0_14] : memref<128x256xf32, #tpu.memory_space<vmem>>, vector<128x256xf32>
      %c1 = arith.constant 1 : index
      %c0_15 = arith.constant 0 : index
      %c0_16 = arith.constant 0 : index
      %14 = vector.load %arg3[%c1, %c0_15, %c0_16] : memref<3x128x256xf32, #tpu.memory_space<vmem>>, vector<1x128x256xf32>
      %15 = vector.shape_cast %14 : vector<1x128x256xf32> to vector<128x256xf32>
      %16 = arith.addf %13, %15 : vector<128x256xf32>
      %c0_17 = arith.constant 0 : index
      %c0_18 = arith.constant 0 : index
      %17 = vector.load %arg6[%c0_17, %c0_18] : memref<128x256xf32, #tpu.memory_space<vmem>>, vector<128x256xf32>
      tpu.vector_store %arg6[%c0_17, %c0_18], %16 {strides = array<i32>} : memref<128x256xf32, #tpu.memory_space<vmem>>, vector<128x256xf32>,
      %c0_19 = arith.constant 0 : index
      %c0_20 = arith.constant 0 : index
      %18 = vector.load %arg6[%c0_19, %c0_20] : memref<128x256xf32, #tpu.memory_space<vmem>>, vector<128x256xf32>
      %c2 = arith.constant 2 : index
      %c0_21 = arith.constant 0 : index
      %c0_22 = arith.constant 0 : index
      %19 = vector.load %arg3[%c2, %c0_21, %c0_22] : memref<3x128x256xf32, #tpu.memory_space<vmem>>, vector<1x128x256xf32>
      %20 = vector.shape_cast %19 : vector<1x128x256xf32> to vector<128x256xf32>
      %21 = arith.addf %18, %20 : vector<128x256xf32>
      %c0_23 = arith.constant 0 : index
      %c0_24 = arith.constant 0 : index
      %22 = vector.load %arg6[%c0_23, %c0_24] : memref<128x256xf32, #tpu.memory_space<vmem>>, vector<128x256xf32>
      tpu.vector_store %arg6[%c0_23, %c0_24], %21 {strides = array<i32>} : memref<128x256xf32, #tpu.memory_space<vmem>>, vector<128x256xf32>,
    } else {
    }
    %c0 = arith.constant 0 : index
    %c0_1 = arith.constant 0 : index
    %3 = vector.load %arg2[%c0, %c0_1] : memref<256x128xf32, #tpu.memory_space<vmem>>, vector<256x128xf32>
    %c0_2 = arith.constant 0 : index
    %c0_3 = arith.constant 0 : index
    %4 = vector.load %arg6[%c0_2, %c0_3] : memref<128x256xf32, #tpu.memory_space<vmem>>, vector<128x256xf32>
    %cst = arith.constant dense<0.000000e+00> : vector<256x256xf32>
    %5 = tpu.matmul %3, %4, %cst {dimension_numbers = #tpu.dot_dimension_numbers<[1], [0], [0], [1], [0, 0, 1, 1], [], []>} : vector<256x128xf32>, vector<128x256xf32>, vector<256x256xf32> -> vector<256x256xf32>
    %c0_4 = arith.constant 0 : index
    %c0_5 = arith.constant 0 : index
    %6 = vector.load %arg4[%c0_4, %c0_5] : memref<1x256xf32, #tpu.memory_space<vmem>>, vector<1x256xf32>
    %7 = vector.broadcast %6 : vector<1x256xf32> to vector<256x256xf32>
    %8 = arith.addf %5, %7 : vector<256x256xf32>
    %c0_6 = arith.constant 0 : index
    %c0_7 = arith.constant 0 : index
    %9 = vector.load %arg5[%c0_6, %c0_7] : memref<256x256xf32, #tpu.memory_space<vmem>>, vector<256x256xf32>
    tpu.vector_store %arg5[%c0_6, %c0_7], %8 {strides = array<i32>} : memref<256x256xf32, #tpu.memory_space<vmem>>, vector<256x256xf32>,
    return
  }
  func.func @transform_0(%arg0: i32, %arg1: i32) -> (i32, i32) {
    %c0_i32 = arith.constant 0 : i32
    %c0_i32_0 = arith.constant 0 : i32
    return %arg1, %c0_i32 : i32, i32
  }
  func.func @transform_1(%arg0: i32, %arg1: i32) -> (i32, i32, i32) {
    %c0_i32 = arith.constant 0 : i32
    %c0_i32_0 = arith.constant 0 : i32
    %c0_i32_1 = arith.constant 0 : i32
    return %c0_i32, %c0_i32_0, %arg0 : i32, i32, i32
  }
  func.func @transform_2(%arg0: i32, %arg1: i32) -> (i32, i32) {
    %c0_i32 = arith.constant 0 : i32
    %c0_i32_0 = arith.constant 0 : i32
    return %c0_i32, %arg0 : i32, i32
  }
  func.func @transform_3(%arg0: i32, %arg1: i32) -> (i32, i32) {
    %c0_i32 = arith.constant 0 : i32
    return %arg1, %arg0 : i32, i32
  }
}

</mosaic_0001>

<llo_original>
// kernel: tpu_custom_call.1
$region0: #{tpu_custom_call.1}
  #allocation0 [shape = 'u32[]', space=smem, size = 0x4, offset = 0x4, fixed_abs, tag = 'smem constant byte address 0x4 - core index']
  #allocation1 [shape = 'u32[144,128]{1,0:T(1,128)}', space=vmem, size = 0x12000, scoped, tag = 'internal scratch']
  #allocation2 [shape = 'f32[128,256]{1,0:T(8,128)}', space=vmem, size = 0x20000, scoped, tag = 'scratch operand']
  %s0 = inlined_call_operand.hbm [shape: f32[256,128], index: 0, kind: input, shape index: {}]
  %s1 = inlined_call_operand.hbm [shape: f32[3,128,256], index: 1, kind: input, shape index: {}]
  %s2 = inlined_call_operand.vmem [shape: f32[1,256], index: 2, kind: input, shape index: {}]
  %s3 = inlined_call_operand.hbm [shape: f32[256,256], index: 3, kind: output, shape index: {}]
  %s4 = sld [smem:[#allocation0]]
  $region34: #{tpu_custom_call.1} parent=0
    _
  %s6 = ssub.s32 1, %s4
  %s7 = scalar_select 0, %s6, %s4
  $region1: #{tpu_custom_call.1} parent=0
    #allocation3 [shape = 'u8[131072]{0}', space=vmem, size = 0x20000, scoped, tag = 'input window, operand 0, single buffered']
    #allocation4 [shape = 's32[1]{0}', space=sflag, size = 0x4, scoped, tag = 'scoped memory for tpu_custom_call.1']
    #allocation5 [shape = 's32[1]{0}', space=sflag, size = 0x4, scoped, tag = 'scoped memory for tpu_custom_call.1']
    #allocation6 [shape = 'u8[393216]{0}', space=vmem, size = 0x60000, scoped, tag = 'input window, operand 1, single buffered']
    #allocation7 [shape = 's32[1]{0}', space=sflag, size = 0x4, scoped, tag = 'scoped memory for tpu_custom_call.1']
    #allocation8 [shape = 'u8[262144]{0}', space=vmem, size = 0x40000, scoped, tag = 'output window, operand 0, single buffered']
    %8 = vsyncpa [#allocation4], 0
    %9 = vsyncpa [#allocation7], 0
    %10 = vsyncpa [#allocation5], 0
    // Predicated region
    $region2: #{tpu_custom_call.1} parent=1 // pred_check
      _
    $region3: #{tpu_custom_call.1} parent=1 // pred_check_branch
      %12 = sbr.rel (0) target = $region5
    $region4: #{tpu_custom_call.1} parent=1 // pred_region
      %s14 = ssub.s32 4096, 4096
      %15 = vsyncadd [#allocation4], %s14
      %s16 = sshll.u32 [#allocation3], 4
      %s17 = int_to_ptr.vmem [resolvable:$true] %s16
      %22 = dma.hbm_to_vmem [thread:$0]  %s0, 4096, %s17, [#allocation4], 128, 128, 8
    $region5: #{tpu_custom_call.1} parent=1 // pred_fallthru
      _
    // Predicated region
    $region6: #{tpu_custom_call.1} parent=1 // pred_check
      _
    $region7: #{tpu_custom_call.1} parent=1 // pred_check_branch
      %24 = sbr.rel (0) target = $region9
    $region8: #{tpu_custom_call.1} parent=1 // pred_region
      %s26 = ssub.s32 12288, 12288
      %27 = vsyncadd [#allocation7], %s26
      %s28 = sshll.u32 [#allocation6], 4
      %s29 = int_to_ptr.vmem [resolvable:$true] %s28
      %34 = dma.hbm_to_vmem [thread:$0]  %s1, 12288, %s29, [#allocation7], 256, 256, 16
    $region9: #{tpu_custom_call.1} parent=1 // pred_fallthru
      _
    // Predicated region
    $region10: #{tpu_custom_call.1} parent=1 // pred_check
      _
    $region11: #{tpu_custom_call.1} parent=1 // pred_check_branch
      %36 = sbr.rel (0) target = $region13
    $region12: #{tpu_custom_call.1} parent=1 // pred_region
      _
    $region13: #{tpu_custom_call.1} parent=1 // pred_fallthru
      _
    // Predicated region
    $region14: #{tpu_custom_call.1} parent=1 // pred_check
      _
    $region15: #{tpu_custom_call.1} parent=1 // pred_check_branch
      %38 = sbr.rel (0) target = $region17
    $region16: #{tpu_custom_call.1} parent=1 // pred_region
      %39 = dma.done [#allocation4], 4096
    $region17: #{tpu_custom_call.1} parent=1 // pred_fallthru
      _
    // Predicated region
    $region18: #{tpu_custom_call.1} parent=1 // pred_check
      _
    $region19: #{tpu_custom_call.1} parent=1 // pred_check_branch
      %41 = sbr.rel (0) target = $region21
    $region20: #{tpu_custom_call.1} parent=1 // pred_region
      %42 = dma.done [#allocation7], 12288
    $region21: #{tpu_custom_call.1} parent=1 // pred_fallthru
      _
    %p43 = scmp.eq.s32.totalorder 0, 0
    // Predicated region
    $region22: #{tpu_custom_call.1} parent=1 // pred_check
      %p44 = pneg %p43
    $region23: #{tpu_custom_call.1} parent=1 // pred_check_branch
      %46 = sbr.rel (%p44) target = $region25
    $region24: #{tpu_custom_call.1} parent=1 // pred_region
      %v47 = vld [vmem:[#allocation6] sm:$0xff]
      %v48 = vld [vmem:[#allocation6 + $0x8] sm:$0xff]
      %v49 = vld [vmem:[#allocation6 + $0x10] sm:$0xff]
      %v50 = vld [vmem:[#allocation6 + $0x18] sm:$0xff]
      %v51 = vld [vmem:[#allocation6 + $0x20] sm:$0xff]
      %v52 = vld [vmem:[#allocation6 + $0x28] sm:$0xff]
      %v53 = vld [vmem:[#allocation6 + $0x30] sm:$0xff]
      %v54 = vld [vmem:[#allocation6 + $0x38] sm:$0xff]
      %v55 = vld [vmem:[#allocation6 + $0x40] sm:$0xff]
      %v56 = vld [vmem:[#allocation6 + $0x48] sm:$0xff]
      %v57 = vld [vmem:[#allocation6 + $0x50] sm:$0xff]
      %v58 = vld [vmem:[#allocation6 + $0x58] sm:$0xff]
      %v59 = vld [vmem:[#allocation6 + $0x60] sm:$0xff]
      %v60 = vld [vmem:[#allocation6 + $0x68] sm:$0xff]
      %v61 = vld [vmem:[#allocation6 + $0x70] sm:$0xff]
      %v62 = vld [vmem:[#allocation6 + $0x78] sm:$0xff]
      %v63 = vld [vmem:[#allocation6 + $0x80] sm:$0xff]
      %v64 = vld [vmem:[#allocation6 + $0x88] sm:$0xff]
      %v65 = vld [vmem:[#allocation6 + $0x90] sm:$0xff]
      %v66 = vld [vmem:[#allocation6 + $0x98] sm:$0xff]
      %v67 = vld [vmem:[#allocation6 + $0xa0] sm:$0xff]
      %v68 = vld [vmem:[#allocation6 + $0xa8] sm:$0xff]
      %v69 = vld [vmem:[#allocation6 + $0xb0] sm:$0xff]
      %v70 = vld [vmem:[#allocation6 + $0xb8] sm:$0xff]
      %v71 = vld [vmem:[#allocation6 + $0xc0] sm:$0xff]
      %v72 = vld [vmem:[#allocation6 + $0xc8] sm:$0xff]
      %v73 = vld [vmem:[#allocation6 + $0xd0] sm:$0xff]
      %v74 = vld [vmem:[#allocation6 + $0xd8] sm:$0xff]
      %v75 = vld [vmem:[#allocation6 + $0xe0] sm:$0xff]
      %v76 = vld [vmem:[#allocation6 + $0xe8] sm:$0xff]
      %v77 = vld [vmem:[#allocation6 + $0xf0] sm:$0xff]
      %v78 = vld [vmem:[#allocation6 + $0xf8] sm:$0xff]
      %79 = vst [vmem:[#allocation2] sm:$0xff] %v47
      %80 = vst [vmem:[#allocation2 + $0x8] sm:$0xff] %v48
      %81 = vst [vmem:[#allocation2 + $0x10] sm:$0xff] %v49
      %82 = vst [vmem:[#allocation2 + $0x18] sm:$0xff] %v50
      %83 = vst [vmem:[#allocation2 + $0x20] sm:$0xff] %v51
      %84 = vst [vmem:[#allocation2 + $0x28] sm:$0xff] %v52
      %85 = vst [vmem:[#allocation2 + $0x30] sm:$0xff] %v53
      %86 = vst [vmem:[#allocation2 + $0x38] sm:$0xff] %v54
      %87 = vst [vmem:[#allocation2 + $0x40] sm:$0xff] %v55
      %88 = vst [vmem:[#allocation2 + $0x48] sm:$0xff] %v56
      %89 = vst [vmem:[#allocation2 + $0x50] sm:$0xff] %v57
      %90 = vst [vmem:[#allocation2 + $0x58] sm:$0xff] %v58
      %91 = vst [vmem:[#allocation2 + $0x60] sm:$0xff] %v59
      %92 = vst [vmem:[#allocation2 + $0x68] sm:$0xff] %v60
      %93 = vst [vmem:[#allocation2 + $0x70] sm:$0xff] %v61
      %94 = vst [vmem:[#allocation2 + $0x78] sm:$0xff] %v62
      %95 = vst [vmem:[#allocation2 + $0x80] sm:$0xff] %v63
      %96 = vst [vmem:[#allocation2 + $0x88] sm:$0xff] %v64
      %97 = vst [vmem:[#allocation2 + $0x90] sm:$0xff] %v65
      %98 = vst [vmem:[#allocation2 + $0x98] sm:$0xff] %v66
      %99 = vst [vmem:[#allocation2 + $0xa0] sm:$0xff] %v67
      %100 = vst [vmem:[#allocation2 + $0xa8] sm:$0xff] %v68
      %101 = vst [vmem:[#allocation2 + $0xb0] sm:$0xff] %v69
      %102 = vst [vmem:[#allocation2 + $0xb8] sm:$0xff] %v70
      %103 = vst [vmem:[#allocation2 + $0xc0] sm:$0xff] %v71
      %104 = vst [vmem:[#allocation2 + $0xc8] sm:$0xff] %v72
      %105 = vst [vmem:[#allocation2 + $0xd0] sm:$0xff] %v73
      %106 = vst [vmem:[#allocation2 + $0xd8] sm:$0xff] %v74
      %107 = vst [vmem:[#allocation2 + $0xe0] sm:$0xff] %v75
      %108 = vst [vmem:[#allocation2 + $0xe8] sm:$0xff] %v76
      %109 = vst [vmem:[#allocation2 + $0xf0] sm:$0xff] %v77
      %110 = vst [vmem:[#allocation2 + $0xf8] sm:$0xff] %v78
      %v111 = vld [vmem:[#allocation2] sm:$0xff]
      %v112 = vld [vmem:[#allocation2 + $0x8] sm:$0xff]
      %v113 = vld [vmem:[#allocation2 + $0x10] sm:$0xff]
      %v114 = vld [vmem:[#allocation2 + $0x18] sm:$0xff]
      %v115 = vld [vmem:[#allocation2 + $0x20] sm:$0xff]
      %v116 = vld [vmem:[#allocation2 + $0x28] sm:$0xff]
      %v117 = vld [vmem:[#allocation2 + $0x30] sm:$0xff]
      %v118 = vld [vmem:[#allocation2 + $0x38] sm:$0xff]
      %v119 = vld [vmem:[#allocation2 + $0x40] sm:$0xff]
      %v120 = vld [vmem:[#allocation2 + $0x48] sm:$0xff]
      %v121 = vld [vmem:[#allocation2 + $0x50] sm:$0xff]
      %v122 = vld [vmem:[#allocation2 + $0x58] sm:$0xff]
      %v123 = vld [vmem:[#allocation2 + $0x60] sm:$0xff]
      %v124 = vld [vmem:[#allocation2 + $0x68] sm:$0xff]
      %v125 = vld [vmem:[#allocation2 + $0x70] sm:$0xff]
      %v126 = vld [vmem:[#allocation2 + $0x78] sm:$0xff]
      %v127 = vld [vmem:[#allocation2 + $0x80] sm:$0xff]
      %v128 = vld [vmem:[#allocation2 + $0x88] sm:$0xff]
      %v129 = vld [vmem:[#allocation2 + $0x90] sm:$0xff]
      %v130 = vld [vmem:[#allocation2 + $0x98] sm:$0xff]
      %v131 = vld [vmem:[#allocation2 + $0xa0] sm:$0xff]
      %v132 = vld [vmem:[#allocation2 + $0xa8] sm:$0xff]
      %v133 = vld [vmem:[#allocation2 + $0xb0] sm:$0xff]
      %v134 = vld [vmem:[#allocation2 + $0xb8] sm:$0xff]
      %v135 = vld [vmem:[#allocation2 + $0xc0] sm:$0xff]
      %v136 = vld [vmem:[#allocation2 + $0xc8] sm:$0xff]
      %v137 = vld [vmem:[#allocation2 + $0xd0] sm:$0xff]
      %v138 = vld [vmem:[#allocation2 + $0xd8] sm:$0xff]
      %v139 = vld [vmem:[#allocation2 + $0xe0] sm:$0xff]
      %v140 = vld [vmem:[#allocation2 + $0xe8] sm:$0xff]
      %v141 = vld [vmem:[#allocation2 + $0xf0] sm:$0xff]
      %v142 = vld [vmem:[#allocation2 + $0xf8] sm:$0xff]
      %s143 = scalar_lea.vmem [#allocation6], 256
      %v144 = vld [vmem:[%s143] sm:$0xff]
      %v145 = vld [vmem:[%s143 + $0x8] sm:$0xff]
      %v146 = vld [vmem:[%s143 + $0x10] sm:$0xff]
      %v147 = vld [vmem:[%s143 + $0x18] sm:$0xff]
      %v148 = vld [vmem:[%s143 + $0x20] sm:$0xff]
      %v149 = vld [vmem:[%s143 + $0x28] sm:$0xff]
      %v150 = vld [vmem:[%s143 + $0x30] sm:$0xff]
      %v151 = vld [vmem:[%s143 + $0x38] sm:$0xff]
      %v152 = vld [vmem:[%s143 + $0x40] sm:$0xff]
      %v153 = vld [vmem:[%s143 + $0x48] sm:$0xff]
      %v154 = vld [vmem:[%s143 + $0x50] sm:$0xff]
      %v155 = vld [vmem:[%s143 + $0x58] sm:$0xff]
      %v156 = vld [vmem:[%s143 + $0x60] sm:$0xff]
      %v157 = vld [vmem:[%s143 + $0x68] sm:$0xff]
      %v158 = vld [vmem:[%s143 + $0x70] sm:$0xff]
      %v159 = vld [vmem:[%s143 + $0x78] sm:$0xff]
      %v160 = vld [vmem:[%s143 + $0x80] sm:$0xff]
      %v161 = vld [vmem:[%s143 + $0x88] sm:$0xff]
      %v162 = vld [vmem:[%s143 + $0x90] sm:$0xff]
      %v163 = vld [vmem:[%s143 + $0x98] sm:$0xff]
      %v164 = vld [vmem:[%s143 + $0xa0] sm:$0xff]
      %v165 = vld [vmem:[%s143 + $0xa8] sm:$0xff]
      %v166 = vld [vmem:[%s143 + $0xb0] sm:$0xff]
      %v167 = vld [vmem:[%s143 + $0xb8] sm:$0xff]
      %v168 = vld [vmem:[%s143 + $0xc0] sm:$0xff]
      %v169 = vld [vmem:[%s143 + $0xc8] sm:$0xff]
      %v170 = vld [vmem:[%s143 + $0xd0] sm:$0xff]
      %v171 = vld [vmem:[%s143 + $0xd8] sm:$0xff]
      %v172 = vld [vmem:[%s143 + $0xe0] sm:$0xff]
      %v173 = vld [vmem:[%s143 + $0xe8] sm:$0xff]
      %v174 = vld [vmem:[%s143 + $0xf0] sm:$0xff]
      %v175 = vld [vmem:[%s143 + $0xf8] sm:$0xff]
      %v176 = vadd.f32 %v111, %v144
      %v177 = vadd.f32 %v112, %v145
      %v178 = vadd.f32 %v113, %v146
      %v179 = vadd.f32 %v114, %v147
      %v180 = vadd.f32 %v115, %v148
      %v181 = vadd.f32 %v116, %v149
      %v182 = vadd.f32 %v117, %v150
      %v183 = vadd.f32 %v118, %v151
      %v184 = vadd.f32 %v119, %v152
      %v185 = vadd.f32 %v120, %v153
      %v186 = vadd.f32 %v121, %v154
      %v187 = vadd.f32 %v122, %v155
      %v188 = vadd.f32 %v123, %v156
      %v189 = vadd.f32 %v124, %v157
      %v190 = vadd.f32 %v125, %v158
      %v191 = vadd.f32 %v126, %v159
      %v192 = vadd.f32 %v127, %v160
      %v193 = vadd.f32 %v128, %v161
      %v194 = vadd.f32 %v129, %v162
      %v195 = vadd.f32 %v130, %v163
      %v196 = vadd.f32 %v131, %v164
      %v197 = vadd.f32 %v132, %v165
      %v198 = vadd.f32 %v133, %v166
      %v199 = vadd.f32 %v134, %v167
      %v200 = vadd.f32 %v135, %v168
      %v201 = vadd.f32 %v136, %v169
      %v202 = vadd.f32 %v137, %v170
      %v203 = vadd.f32 %v138, %v171
      %v204 = vadd.f32 %v139, %v172
      %v205 = vadd.f32 %v140, %v173
      %v206 = vadd.f32 %v141, %v174
      %v207 = vadd.f32 %v142, %v175
      %208 = vst [vmem:[#allocation2] sm:$0xff] %v176
      %209 = vst [vmem:[#allocation2 + $0x8] sm:$0xff] %v177
      %210 = vst [vmem:[#allocation2 + $0x10] sm:$0xff] %v178
      %211 = vst [vmem:[#allocation2 + $0x18] sm:$0xff] %v179
      %212 = vst [vmem:[#allocation2 + $0x20] sm:$0xff] %v180
      %213 = vst [vmem:[#allocation2 + $0x28] sm:$0xff] %v181
      %214 = vst [vmem:[#allocation2 + $0x30] sm:$0xff] %v182
      %215 = vst [vmem:[#allocation2 + $0x38] sm:$0xff] %v183
      %216 = vst [vmem:[#allocation2 + $0x40] sm:$0xff] %v184
      %217 = vst [vmem:[#allocation2 + $0x48] sm:$0xff] %v185
      %218 = vst [vmem:[#allocation2 + $0x50] sm:$0xff] %v186
      %219 = vst [vmem:[#allocation2 + $0x58] sm:$0xff] %v187
      %220 = vst [vmem:[#allocation2 + $0x60] sm:$0xff] %v188
      %221 = vst [vmem:[#allocation2 + $0x68] sm:$0xff] %v189
      %222 = vst [vmem:[#allocation2 + $0x70] sm:$0xff] %v190
      %223 = vst [vmem:[#allocation2 + $0x78] sm:$0xff] %v191
      %224 = vst [vmem:[#allocation2 + $0x80] sm:$0xff] %v192
      %225 = vst [vmem:[#allocation2 + $0x88] sm:$0xff] %v193
      %226 = vst [vmem:[#allocation2 + $0x90] sm:$0xff] %v194
      %227 = vst [vmem:[#allocation2 + $0x98] sm:$0xff] %v195
      %228 = vst [vmem:[#allocation2 + $0xa0] sm:$0xff] %v196
      %229 = vst [vmem:[#allocation2 + $0xa8] sm:$0xff] %v197
      %230 = vst [vmem:[#allocation2 + $0xb0] sm:$0xff] %v198
      %231 = vst [vmem:[#allocation2 + $0xb8] sm:$0xff] %v199
      %232 = vst [vmem:[#allocation2 + $0xc0] sm:$0xff] %v200
      %233 = vst [vmem:[#allocation2 + $0xc8] sm:$0xff] %v201
      %234 = vst [vmem:[#allocation2 + $0xd0] sm:$0xff] %v202
      %235 = vst [vmem:[#allocation2 + $0xd8] sm:$0xff] %v203
      %236 = vst [vmem:[#allocation2 + $0xe0] sm:$0xff] %v204
      %237 = vst [vmem:[#allocation2 + $0xe8] sm:$0xff] %v205
      %238 = vst [vmem:[#allocation2 + $0xf0] sm:$0xff] %v206
      %239 = vst [vmem:[#allocation2 + $0xf8] sm:$0xff] %v207
      %v240 = vld [vmem:[#allocation2] sm:$0xff]
      %v241 = vld [vmem:[#allocation2 + $0x8] sm:$0xff]
      %v242 = vld [vmem:[#allocation2 + $0x10] sm:$0xff]
      %v243 = vld [vmem:[#allocation2 + $0x18] sm:$0xff]
      %v244 = vld [vmem:[#allocation2 + $0x20] sm:$0xff]
      %v245 = vld [vmem:[#allocation2 + $0x28] sm:$0xff]
      %v246 = vld [vmem:[#allocation2 + $0x30] sm:$0xff]
      %v247 = vld [vmem:[#allocation2 + $0x38] sm:$0xff]
      %v248 = vld [vmem:[#allocation2 + $0x40] sm:$0xff]
      %v249 = vld [vmem:[#allocation2 + $0x48] sm:$0xff]
      %v250 = vld [vmem:[#allocation2 + $0x50] sm:$0xff]
      %v251 = vld [vmem:[#allocation2 + $0x58] sm:$0xff]
      %v252 = vld [vmem:[#allocation2 + $0x60] sm:$0xff]
      %v253 = vld [vmem:[#allocation2 + $0x68] sm:$0xff]
      %v254 = vld [vmem:[#allocation2 + $0x70] sm:$0xff]
      %v255 = vld [vmem:[#allocation2 + $0x78] sm:$0xff]
      %v256 = vld [vmem:[#allocation2 + $0x80] sm:$0xff]
      %v257 = vld [vmem:[#allocation2 + $0x88] sm:$0xff]
      %v258 = vld [vmem:[#allocation2 + $0x90] sm:$0xff]
      %v259 = vld [vmem:[#allocation2 + $0x98] sm:$0xff]
      %v260 = vld [vmem:[#allocation2 + $0xa0] sm:$0xff]
      %v261 = vld [vmem:[#allocation2 + $0xa8] sm:$0xff]
      %v262 = vld [vmem:[#allocation2 + $0xb0] sm:$0xff]
      %v263 = vld [vmem:[#allocation2 + $0xb8] sm:$0xff]
      %v264 = vld [vmem:[#allocation2 + $0xc0] sm:$0xff]
      %v265 = vld [vmem:[#allocation2 + $0xc8] sm:$0xff]
      %v266 = vld [vmem:[#allocation2 + $0xd0] sm:$0xff]
      %v267 = vld [vmem:[#allocation2 + $0xd8] sm:$0xff]
      %v268 = vld [vmem:[#allocation2 + $0xe0] sm:$0xff]
      %v269 = vld [vmem:[#allocation2 + $0xe8] sm:$0xff]
      %v270 = vld [vmem:[#allocation2 + $0xf0] sm:$0xff]
      %v271 = vld [vmem:[#allocation2 + $0xf8] sm:$0xff]
      %s272 = scalar_lea.vmem [#allocation6], 512
      %v273 = vld [vmem:[%s272] sm:$0xff]
      %v274 = vld [vmem:[%s272 + $0x8] sm:$0xff]
      %v275 = vld [vmem:[%s272 + $0x10] sm:$0xff]
      %v276 = vld [vmem:[%s272 + $0x18] sm:$0xff]
      %v277 = vld [vmem:[%s272 + $0x20] sm:$0xff]
      %v278 = vld [vmem:[%s272 + $0x28] sm:$0xff]
      %v279 = vld [vmem:[%s272 + $0x30] sm:$0xff]
      %v280 = vld [vmem:[%s272 + $0x38] sm:$0xff]
      %v281 = vld [vmem:[%s272 + $0x40] sm:$0xff]
      %v282 = vld [vmem:[%s272 + $0x48] sm:$0xff]
      %v283 = vld [vmem:[%s272 + $0x50] sm:$0xff]
      %v284 = vld [vmem:[%s272 + $0x58] sm:$0xff]
      %v285 = vld [vmem:[%s272 + $0x60] sm:$0xff]
      %v286 = vld [vmem:[%s272 + $0x68] sm:$0xff]
      %v287 = vld [vmem:[%s272 + $0x70] sm:$0xff]
      %v288 = vld [vmem:[%s272 + $0x78] sm:$0xff]
      %v289 = vld [vmem:[%s272 + $0x80] sm:$0xff]
      %v290 = vld [vmem:[%s272 + $0x88] sm:$0xff]
      %v291 = vld [vmem:[%s272 + $0x90] sm:$0xff]
      %v292 = vld [vmem:[%s272 + $0x98] sm:$0xff]
      %v293 = vld [vmem:[%s272 + $0xa0] sm:$0xff]
      %v294 = vld [vmem:[%s272 + $0xa8] sm:$0xff]
      %v295 = vld [vmem:[%s272 + $0xb0] sm:$0xff]
      %v296 = vld [vmem:[%s272 + $0xb8] sm:$0xff]
      %v297 = vld [vmem:[%s272 + $0xc0] sm:$0xff]
      %v298 = vld [vmem:[%s272 + $0xc8] sm:$0xff]
      %v299 = vld [vmem:[%s272 + $0xd0] sm:$0xff]
      %v300 = vld [vmem:[%s272 + $0xd8] sm:$0xff]
      %v301 = vld [vmem:[%s272 + $0xe0] sm:$0xff]
      %v302 = vld [vmem:[%s272 + $0xe8] sm:$0xff]
      %v303 = vld [vmem:[%s272 + $0xf0] sm:$0xff]
      %v304 = vld [vmem:[%s272 + $0xf8] sm:$0xff]
      %v305 = vadd.f32 %v240, %v273
      %v306 = vadd.f32 %v241, %v274
      %v307 = vadd.f32 %v242, %v275
      %v308 = vadd.f32 %v243, %v276
      %v309 = vadd.f32 %v244, %v277
      %v310 = vadd.f32 %v245, %v278
      %v311 = vadd.f32 %v246, %v279
      %v312 = vadd.f32 %v247, %v280
      %v313 = vadd.f32 %v248, %v281
      %v314 = vadd.f32 %v249, %v282
      %v315 = vadd.f32 %v250, %v283
      %v316 = vadd.f32 %v251, %v284
      %v317 = vadd.f32 %v252, %v285
      %v318 = vadd.f32 %v253, %v286
      %v319 = vadd.f32 %v254, %v287
      %v320 = vadd.f32 %v255, %v288
      %v321 = vadd.f32 %v256, %v289
      %v322 = vadd.f32 %v257, %v290
      %v323 = vadd.f32 %v258, %v291
      %v324 = vadd.f32 %v259, %v292
      %v325 = vadd.f32 %v260, %v293
      %v326 = vadd.f32 %v261, %v294
      %v327 = vadd.f32 %v262, %v295
      %v328 = vadd.f32 %v263, %v296
      %v329 = vadd.f32 %v264, %v297
      %v330 = vadd.f32 %v265, %v298
      %v331 = vadd.f32 %v266, %v299
      %v332 = vadd.f32 %v267, %v300
      %v333 = vadd.f32 %v268, %v301
      %v334 = vadd.f32 %v269, %v302
      %v335 = vadd.f32 %v270, %v303
      %v336 = vadd.f32 %v271, %v304
      %337 = vst [vmem:[#allocation2] sm:$0xff] %v305
      %338 = vst [vmem:[#allocation2 + $0x8] sm:$0xff] %v306
      %339 = vst [vmem:[#allocation2 + $0x10] sm:$0xff] %v307
      %340 = vst [vmem:[#allocation2 + $0x18] sm:$0xff] %v308
      %341 = vst [vmem:[#allocation2 + $0x20] sm:$0xff] %v309
      %342 = vst [vmem:[#allocation2 + $0x28] sm:$0xff] %v310
      %343 = vst [vmem:[#allocation2 + $0x30] sm:$0xff] %v311
      %344 = vst [vmem:[#allocation2 + $0x38] sm:$0xff] %v312
      %345 = vst [vmem:[#allocation2 + $0x40] sm:$0xff] %v313
      %346 = vst [vmem:[#allocation2 + $0x48] sm:$0xff] %v314
      %347 = vst [vmem:[#allocation2 + $0x50] sm:$0xff] %v315
      %348 = vst [vmem:[#allocation2 + $0x58] sm:$0xff] %v316
      %349 = vst [vmem:[#allocation2 + $0x60] sm:$0xff] %v317
      %350 = vst [vmem:[#allocation2 + $0x68] sm:$0xff] %v318
      %351 = vst [vmem:[#allocation2 + $0x70] sm:$0xff] %v319
      %352 = vst [vmem:[#allocation2 + $0x78] sm:$0xff] %v320
      %353 = vst [vmem:[#allocation2 + $0x80] sm:$0xff] %v321
      %354 = vst [vmem:[#allocation2 + $0x88] sm:$0xff] %v322
      %355 = vst [vmem:[#allocation2 + $0x90] sm:$0xff] %v323
      %356 = vst [vmem:[#allocation2 + $0x98] sm:$0xff] %v324
      %357 = vst [vmem:[#allocation2 + $0xa0] sm:$0xff] %v325
      %358 = vst [vmem:[#allocation2 + $0xa8] sm:$0xff] %v326
      %359 = vst [vmem:[#allocation2 + $0xb0] sm:$0xff] %v327
      %360 = vst [vmem:[#allocation2 + $0xb8] sm:$0xff] %v328
      %361 = vst [vmem:[#allocation2 + $0xc0] sm:$0xff] %v329
      %362 = vst [vmem:[#allocation2 + $0xc8] sm:$0xff] %v330
      %363 = vst [vmem:[#allocation2 + $0xd0] sm:$0xff] %v331
      %364 = vst [vmem:[#allocation2 + $0xd8] sm:$0xff] %v332
      %365 = vst [vmem:[#allocation2 + $0xe0] sm:$0xff] %v333
      %366 = vst [vmem:[#allocation2 + $0xe8] sm:$0xff] %v334
      %367 = vst [vmem:[#allocation2 + $0xf0] sm:$0xff] %v335
      %368 = vst [vmem:[#allocation2 + $0xf8] sm:$0xff] %v336
    $region25: #{tpu_custom_call.1} parent=1 // pred_fallthru
      _
    %v369 = vld [vmem:[#allocation3] sm:$0xff]
    %v370 = vld [vmem:[#allocation3 + $0x8] sm:$0xff]
    %v371 = vld [vmem:[#allocation3 + $0x10] sm:$0xff]
    %v372 = vld [vmem:[#allocation3 + $0x18] sm:$0xff]
    %v373 = vld [vmem:[#allocation3 + $0x20] sm:$0xff]
    %v374 = vld [vmem:[#allocation3 + $0x28] sm:$0xff]
    %v375 = vld [vmem:[#allocation3 + $0x30] sm:$0xff]
    %v376 = vld [vmem:[#allocation3 + $0x38] sm:$0xff]
    %v377 = vld [vmem:[#allocation3 + $0x40] sm:$0xff]
    %v378 = vld [vmem:[#allocation3 + $0x48] sm:$0xff]
    %v379 = vld [vmem:[#allocation3 + $0x50] sm:$0xff]
    %v380 = vld [vmem:[#allocation3 + $0x58] sm:$0xff]
    %v381 = vld [vmem:[#allocation3 + $0x60] sm:$0xff]
    %v382 = vld [vmem:[#allocation3 + $0x68] sm:$0xff]
    %v383 = vld [vmem:[#allocation3 + $0x70] sm:$0xff]
    %v384 = vld [vmem:[#allocation3 + $0x78] sm:$0xff]
    %v385 = vld [vmem:[#allocation3 + $0x80] sm:$0xff]
    %v386 = vld [vmem:[#allocation3 + $0x88] sm:$0xff]
    %v387 = vld [vmem:[#allocation3 + $0x90] sm:$0xff]
    %v388 = vld [vmem:[#allocation3 + $0x98] sm:$0xff]
    %v389 = vld [vmem:[#allocation3 + $0xa0] sm:$0xff]
    %v390 = vld [vmem:[#allocation3 + $0xa8] sm:$0xff]
    %v391 = vld [vmem:[#allocation3 + $0xb0] sm:$0xff]
    %v392 = vld [vmem:[#allocation3 + $0xb8] sm:$0xff]
    %v393 = vld [vmem:[#allocation3 + $0xc0] sm:$0xff]
    %v394 = vld [vmem:[#allocation3 + $0xc8] sm:$0xff]
    %v395 = vld [vmem:[#allocation3 + $0xd0] sm:$0xff]
    %v396 = vld [vmem:[#allocation3 + $0xd8] sm:$0xff]
    %v397 = vld [vmem:[#allocation3 + $0xe0] sm:$0xff]
    %v398 = vld [vmem:[#allocation3 + $0xe8] sm:$0xff]
    %v399 = vld [vmem:[#allocation3 + $0xf0] sm:$0xff]
    %v400 = vld [vmem:[#allocation3 + $0xf8] sm:$0xff]
    %v401 = vld [vmem:[#allocation2] sm:$0xff]
    %v402 = vld [vmem:[#allocation2 + $0x8] sm:$0xff]
    %v403 = vld [vmem:[#allocation2 + $0x10] sm:$0xff]
    %v404 = vld [vmem:[#allocation2 + $0x18] sm:$0xff]
    %v405 = vld [vmem:[#allocation2 + $0x20] sm:$0xff]
    %v406 = vld [vmem:[#allocation2 + $0x28] sm:$0xff]
    %v407 = vld [vmem:[#allocation2 + $0x30] sm:$0xff]
    %v408 = vld [vmem:[#allocation2 + $0x38] sm:$0xff]
    %v409 = vld [vmem:[#allocation2 + $0x40] sm:$0xff]
    %v410 = vld [vmem:[#allocation2 + $0x48] sm:$0xff]
    %v411 = vld [vmem:[#allocation2 + $0x50] sm:$0xff]
    %v412 = vld [vmem:[#allocation2 + $0x58] sm:$0xff]
    %v413 = vld [vmem:[#allocation2 + $0x60] sm:$0xff]
    %v414 = vld [vmem:[#allocation2 + $0x68] sm:$0xff]
    %v415 = vld [vmem:[#allocation2 + $0x70] sm:$0xff]
    %v416 = vld [vmem:[#allocation2 + $0x78] sm:$0xff]
    %v417 = vld [vmem:[#allocation2 + $0x80] sm:$0xff]
    %v418 = vld [vmem:[#allocation2 + $0x88] sm:$0xff]
    %v419 = vld [vmem:[#allocation2 + $0x90] sm:$0xff]
    %v420 = vld [vmem:[#allocation2 + $0x98] sm:$0xff]
    %v421 = vld [vmem:[#allocation2 + $0xa0] sm:$0xff]
    %v422 = vld [vmem:[#allocation2 + $0xa8] sm:$0xff]
    %v423 = vld [vmem:[#allocation2 + $0xb0] sm:$0xff]
    %v424 = vld [vmem:[#allocation2 + $0xb8] sm:$0xff]
    %v425 = vld [vmem:[#allocation2 + $0xc0] sm:$0xff]
    %v426 = vld [vmem:[#allocation2 + $0xc8] sm:$0xff]
    %v427 = vld [vmem:[#allocation2 + $0xd0] sm:$0xff]
    %v428 = vld [vmem:[#allocation2 + $0xd8] sm:$0xff]
    %v429 = vld [vmem:[#allocation2 + $0xe0] sm:$0xff]
    %v430 = vld [vmem:[#allocation2 + $0xe8] sm:$0xff]
    %v431 = vld [vmem:[#allocation2 + $0xf0] sm:$0xff]
    %v432 = vld [vmem:[#allocation2 + $0xf8] sm:$0xff]
    %v433 = vld [vmem:[%s2] sm:$0x3]
    %v435 = vlaneseq
    %v436 = vshrl.u32 %v435, 7
    %v437 = vsub.s32 0, %v436
    %v438 = vrot.slane %v433, %v437
    %v439 = vlaneseq
    %v440 = vshrl.u32 %v439, 7
    %v441 = vsub.s32 1, %v440
    %v442 = vrot.slane %v433, %v441
    %445 = vmatprep.subr.mxu0 %v432
    %446 = vmatpush1.msra.mxu0 %v431
    %447 = vmatprep.subr.mxu0 %v430
    %448 = vmatpush1.msra.mxu0 %v429
    %449 = vmatprep.subr.mxu0 %v428
    %450 = vmatpush1.msra.mxu0 %v427
    %451 = vmatprep.subr.mxu0 %v426
    %452 = vmatpush1.msra.mxu0 %v425
    %453 = vmatprep.subr.mxu0 %v424
    %454 = vmatpush1.msra.mxu0 %v423
    %455 = vmatprep.subr.mxu0 %v422
    %456 = vmatpush1.msra.mxu0 %v421
    %457 = vmatprep.subr.mxu0 %v420
    %458 = vmatpush1.msra.mxu0 %v419
    %459 = vmatprep.subr.mxu0 %v418
    %460 = vmatpush1.msra.mxu0 %v417
    %461 = vmatprep.subr.mxu0 %v416
    %462 = vmatpush1.msra.mxu0 %v415
    %463 = vmatprep.subr.mxu0 %v414
    %464 = vmatpush1.msra.mxu0 %v413
    %465 = vmatprep.subr.mxu0 %v412
    %466 = vmatpush1.msra.mxu0 %v411
    %467 = vmatprep.subr.mxu0 %v410
    %468 = vmatpush1.msra.mxu0 %v409
    %469 = vmatprep.subr.mxu0 %v408
    %470 = vmatpush1.msra.mxu0 %v407
    %471 = vmatprep.subr.mxu0 %v406
    %472 = vmatpush1.msra.mxu0 %v405
    %473 = vmatprep.subr.mxu0 %v404
    %474 = vmatpush1.msra.mxu0 %v403
    %475 = vmatprep.subr.mxu0 %v402
    %476 = vmatpush1.msra.mxu0 %v401
    %477 = vmatprep.subr.mxu0 0.0
    %478 = vmatpush2.msra.mxu0 0.0
    %479 = vmatprep.subr.mxu0 0.0
    %480 = vmatpush2.msra.mxu0 0.0
    %481 = vmatprep.subr.mxu0 0.0
    %482 = vmatpush2.msra.mxu0 0.0
    %483 = vmatprep.subr.mxu0 0.0
    %484 = vmatpush2.msra.mxu0 0.0
    %485 = vmatprep.subr.mxu0 0.0
    %486 = vmatpush2.msra.mxu0 0.0
    %487 = vmatprep.subr.mxu0 0.0
    %488 = vmatpush2.msra.mxu0 0.0
    %489 = vmatprep.subr.mxu0 0.0
    %490 = vmatpush2.msra.mxu0 0.0
    %491 = vmatprep.subr.mxu0 0.0
    %492 = vmatpush2.msra.mxu0 0.0
    %493 = vmatprep.subr.mxu0 0.0
    %494 = vmatpush2.msra.mxu0 0.0
    %495 = vmatprep.subr.mxu0 0.0
    %496 = vmatpush2.msra.mxu0 0.0
    %497 = vmatprep.subr.mxu0 0.0
    %498 = vmatpush2.msra.mxu0 0.0
    %499 = vmatprep.subr.mxu0 0.0
    %500 = vmatpush2.msra.mxu0 0.0
    %501 = vmatprep.subr.mxu0 0.0
    %502 = vmatpush2.msra.mxu0 0.0
    %503 = vmatprep.subr.mxu0 0.0
    %504 = vmatpush2.msra.mxu0 0.0
    %505 = vmatprep.subr.mxu0 0.0
    %506 = vmatpush2.msra.mxu0 0.0
    %507 = vmatprep.subr.mxu0 0.0
    %508 = vmatpush2.msra.mxu0 0.0
    %509 = vmatprep.mubr.f32.mxu0 0.0
    %510 = vmatmul.mubr.f32.gmra.mxu0 %v369
    %v511 = vpop.f32.mrf.mxu0
    %v512 = vadd.f32 %v438, %v511
    %v513 = vpop.f32.mrf.mxu0
    %v514 = vadd.f32 %v442, %v513
    %515 = vmatprep.mubr.f32.mxu0 0.0
    %516 = vmatmul.mubr.f32.gmra.mxu0 %v370
    %v517 = vpop.f32.mrf.mxu0
    %v518 = vadd.f32 %v438, %v517
    %v519 = vpop.f32.mrf.mxu0
    %v520 = vadd.f32 %v442, %v519
    %521 = vmatprep.mubr.f32.mxu0 0.0
    %522 = vmatmul.mubr.f32.gmra.mxu0 %v371
    %v523 = vpop.f32.mrf.mxu0
    %v524 = vadd.f32 %v438, %v523
    %v525 = vpop.f32.mrf.mxu0
    %v526 = vadd.f32 %v442, %v525
    %527 = vmatprep.mubr.f32.mxu0 0.0
    %528 = vmatmul.mubr.f32.gmra.mxu0 %v372
    %v529 = vpop.f32.mrf.mxu0
    %v530 = vadd.f32 %v438, %v529
    %v531 = vpop.f32.mrf.mxu0
    %v532 = vadd.f32 %v442, %v531
    %533 = vmatprep.mubr.f32.mxu0 0.0
    %534 = vmatmul.mubr.f32.gmra.mxu0 %v373
    %v535 = vpop.f32.mrf.mxu0
    %v536 = vadd.f32 %v438, %v535
    %v537 = vpop.f32.mrf.mxu0
    %v538 = vadd.f32 %v442, %v537
    %539 = vmatprep.mubr.f32.mxu0 0.0
    %540 = vmatmul.mubr.f32.gmra.mxu0 %v374
    %v541 = vpop.f32.mrf.mxu0
    %v542 = vadd.f32 %v438, %v541
    %v543 = vpop.f32.mrf.mxu0
    %v544 = vadd.f32 %v442, %v543
    %545 = vmatprep.mubr.f32.mxu0 0.0
    %546 = vmatmul.mubr.f32.gmra.mxu0 %v375
    %v547 = vpop.f32.mrf.mxu0
    %v548 = vadd.f32 %v438, %v547
    %v549 = vpop.f32.mrf.mxu0
    %v550 = vadd.f32 %v442, %v549
    %551 = vmatprep.mubr.f32.mxu0 0.0
    %552 = vmatmul.mubr.f32.gmra.mxu0 %v376
    %v553 = vpop.f32.mrf.mxu0
    %v554 = vadd.f32 %v438, %v553
    %v555 = vpop.f32.mrf.mxu0
    %v556 = vadd.f32 %v442, %v555
    %557 = vmatprep.mubr.f32.mxu0 0.0
    %558 = vmatmul.mubr.f32.gmra.mxu0 %v377
    %v559 = vpop.f32.mrf.mxu0
    %v560 = vadd.f32 %v438, %v559
    %v561 = vpop.f32.mrf.mxu0
    %v562 = vadd.f32 %v442, %v561
    %563 = vmatprep.mubr.f32.mxu0 0.0
    %564 = vmatmul.mubr.f32.gmra.mxu0 %v378
    %v565 = vpop.f32.mrf.mxu0
    %v566 = vadd.f32 %v438, %v565
    %v567 = vpop.f32.mrf.mxu0
    %v568 = vadd.f32 %v442, %v567
    %569 = vmatprep.mubr.f32.mxu0 0.0
    %570 = vmatmul.mubr.f32.gmra.mxu0 %v379
    %v571 = vpop.f32.mrf.mxu0
    %v572 = vadd.f32 %v438, %v571
    %v573 = vpop.f32.mrf.mxu0
    %v574 = vadd.f32 %v442, %v573
    %575 = vmatprep.mubr.f32.mxu0 0.0
    %576 = vmatmul.mubr.f32.gmra.mxu0 %v380
    %v577 = vpop.f32.mrf.mxu0
    %v578 = vadd.f32 %v438, %v577
    %v579 = vpop.f32.mrf.mxu0
    %v580 = vadd.f32 %v442, %v579
    %581 = vmatprep.mubr.f32.mxu0 0.0
    %582 = vmatmul.mubr.f32.gmra.mxu0 %v381
    %v583 = vpop.f32.mrf.mxu0
    %v584 = vadd.f32 %v438, %v583
    %v585 = vpop.f32.mrf.mxu0
    %v586 = vadd.f32 %v442, %v585
    %587 = vmatprep.mubr.f32.mxu0 0.0
    %588 = vmatmul.mubr.f32.gmra.mxu0 %v382
    %v589 = vpop.f32.mrf.mxu0
    %v590 = vadd.f32 %v438, %v589
    %v591 = vpop.f32.mrf.mxu0
    %v592 = vadd.f32 %v442, %v591
    %593 = vmatprep.mubr.f32.mxu0 0.0
    %594 = vmatmul.mubr.f32.gmra.mxu0 %v383
    %v595 = vpop.f32.mrf.mxu0
    %v596 = vadd.f32 %v438, %v595
    %v597 = vpop.f32.mrf.mxu0
    %v598 = vadd.f32 %v442, %v597
    %599 = vmatprep.mubr.f32.mxu0 0.0
    %600 = vmatmul.mubr.f32.gmra.mxu0 %v384
    %v601 = vpop.f32.mrf.mxu0
    %v602 = vadd.f32 %v438, %v601
    %v603 = vpop.f32.mrf.mxu0
    %v604 = vadd.f32 %v442, %v603
    %605 = vmatprep.mubr.f32.mxu0 0.0
    %606 = vmatmul.mubr.f32.gmra.mxu0 %v385
    %v607 = vpop.f32.mrf.mxu0
    %v608 = vadd.f32 %v438, %v607
    %v609 = vpop.f32.mrf.mxu0
    %v610 = vadd.f32 %v442, %v609
    %611 = vmatprep.mubr.f32.mxu0 0.0
    %612 = vmatmul.mubr.f32.gmra.mxu0 %v386
    %v613 = vpop.f32.mrf.mxu0
    %v614 = vadd.f32 %v438, %v613
    %v615 = vpop.f32.mrf.mxu0
    %v616 = vadd.f32 %v442, %v615
    %617 = vmatprep.mubr.f32.mxu0 0.0
    %618 = vmatmul.mubr.f32.gmra.mxu0 %v387
    %v619 = vpop.f32.mrf.mxu0
    %v620 = vadd.f32 %v438, %v619
    %v621 = vpop.f32.mrf.mxu0
    %v622 = vadd.f32 %v442, %v621
    %623 = vmatprep.mubr.f32.mxu0 0.0
    %624 = vmatmul.mubr.f32.gmra.mxu0 %v388
    %v625 = vpop.f32.mrf.mxu0
    %v626 = vadd.f32 %v438, %v625
    %v627 = vpop.f32.mrf.mxu0
    %v628 = vadd.f32 %v442, %v627
    %629 = vmatprep.mubr.f32.mxu0 0.0
    %630 = vmatmul.mubr.f32.gmra.mxu0 %v389
    %v631 = vpop.f32.mrf.mxu0
    %v632 = vadd.f32 %v438, %v631
    %v633 = vpop.f32.mrf.mxu0
    %v634 = vadd.f32 %v442, %v633
    %635 = vmatprep.mubr.f32.mxu0 0.0
    %636 = vmatmul.mubr.f32.gmra.mxu0 %v390
    %v637 = vpop.f32.mrf.mxu0
    %v638 = vadd.f32 %v438, %v637
    %v639 = vpop.f32.mrf.mxu0
    %v640 = vadd.f32 %v442, %v639
    %641 = vmatprep.mubr.f32.mxu0 0.0
    %642 = vmatmul.mubr.f32.gmra.mxu0 %v391
    %v643 = vpop.f32.mrf.mxu0
    %v644 = vadd.f32 %v438, %v643
    %v645 = vpop.f32.mrf.mxu0
    %v646 = vadd.f32 %v442, %v645
    %647 = vmatprep.mubr.f32.mxu0 0.0
    %648 = vmatmul.mubr.f32.gmra.mxu0 %v392
    %v649 = vpop.f32.mrf.mxu0
    %v650 = vadd.f32 %v438, %v649
    %v651 = vpop.f32.mrf.mxu0
    %v652 = vadd.f32 %v442, %v651
    %653 = vmatprep.mubr.f32.mxu0 0.0
    %654 = vmatmul.mubr.f32.gmra.mxu0 %v393
    %v655 = vpop.f32.mrf.mxu0
    %v656 = vadd.f32 %v438, %v655
    %v657 = vpop.f32.mrf.mxu0
    %v658 = vadd.f32 %v442, %v657
    %659 = vmatprep.mubr.f32.mxu0 0.0
    %660 = vmatmul.mubr.f32.gmra.mxu0 %v394
    %v661 = vpop.f32.mrf.mxu0
    %v662 = vadd.f32 %v438, %v661
    %v663 = vpop.f32.mrf.mxu0
    %v664 = vadd.f32 %v442, %v663
    %665 = vmatprep.mubr.f32.mxu0 0.0
    %666 = vmatmul.mubr.f32.gmra.mxu0 %v395
    %v667 = vpop.f32.mrf.mxu0
    %v668 = vadd.f32 %v438, %v667
    %v669 = vpop.f32.mrf.mxu0
    %v670 = vadd.f32 %v442, %v669
    %671 = vmatprep.mubr.f32.mxu0 0.0
    %672 = vmatmul.mubr.f32.gmra.mxu0 %v396
    %v673 = vpop.f32.mrf.mxu0
    %v674 = vadd.f32 %v438, %v673
    %v675 = vpop.f32.mrf.mxu0
    %v676 = vadd.f32 %v442, %v675
    %677 = vmatprep.mubr.f32.mxu0 0.0
    %678 = vmatmul.mubr.f32.gmra.mxu0 %v397
    %v679 = vpop.f32.mrf.mxu0
    %v680 = vadd.f32 %v438, %v679
    %v681 = vpop.f32.mrf.mxu0
    %v682 = vadd.f32 %v442, %v681
    %683 = vmatprep.mubr.f32.mxu0 0.0
    %684 = vmatmul.mubr.f32.gmra.mxu0 %v398
    %v685 = vpop.f32.mrf.mxu0
    %v686 = vadd.f32 %v438, %v685
    %v687 = vpop.f32.mrf.mxu0
    %v688 = vadd.f32 %v442, %v687
    %689 = vmatprep.mubr.f32.mxu0 0.0
    %690 = vmatmul.mubr.f32.gmra.mxu0 %v399
    %v691 = vpop.f32.mrf.mxu0
    %v692 = vadd.f32 %v438, %v691
    %v693 = vpop.f32.mrf.mxu0
    %v694 = vadd.f32 %v442, %v693
    %695 = vmatprep.mubr.f32.mxu0 0.0
    %696 = vmatmul.mubr.f32.gmra.mxu0 %v400
    %v697 = vpop.f32.mrf.mxu0
    %v698 = vadd.f32 %v438, %v697
    %v699 = vpop.f32.mrf.mxu0
    %v700 = vadd.f32 %v442, %v699
    %701 = vdwg.mxu0
    %702 = vst [vmem:[#allocation8] sm:$0xff] %v512
    %703 = vst [vmem:[#allocation8 + $0x8] sm:$0xff] %v514
    %704 = vst [vmem:[#allocation8 + $0x10] sm:$0xff] %v518
    %705 = vst [vmem:[#allocation8 + $0x18] sm:$0xff] %v520
    %706 = vst [vmem:[#allocation8 + $0x20] sm:$0xff] %v524
    %707 = vst [vmem:[#allocation8 + $0x28] sm:$0xff] %v526
    %708 = vst [vmem:[#allocation8 + $0x30] sm:$0xff] %v530
    %709 = vst [vmem:[#allocation8 + $0x38] sm:$0xff] %v532
    %710 = vst [vmem:[#allocation8 + $0x40] sm:$0xff] %v536
    %711 = vst [vmem:[#allocation8 + $0x48] sm:$0xff] %v538
    %712 = vst [vmem:[#allocation8 + $0x50] sm:$0xff] %v542
    %713 = vst [vmem:[#allocation8 + $0x58] sm:$0xff] %v544
    %714 = vst [vmem:[#allocation8 + $0x60] sm:$0xff] %v548
    %715 = vst [vmem:[#allocation8 + $0x68] sm:$0xff] %v550
    %716 = vst [vmem:[#allocation8 + $0x70] sm:$0xff] %v554
    %717 = vst [vmem:[#allocation8 + $0x78] sm:$0xff] %v556
    %718 = vst [vmem:[#allocation8 + $0x80] sm:$0xff] %v560
    %719 = vst [vmem:[#allocation8 + $0x88] sm:$0xff] %v562
    %720 = vst [vmem:[#allocation8 + $0x90] sm:$0xff] %v566
    %721 = vst [vmem:[#allocation8 + $0x98] sm:$0xff] %v568
    %722 = vst [vmem:[#allocation8 + $0xa0] sm:$0xff] %v572
    %723 = vst [vmem:[#allocation8 + $0xa8] sm:$0xff] %v574
    %724 = vst [vmem:[#allocation8 + $0xb0] sm:$0xff] %v578
    %725 = vst [vmem:[#allocation8 + $0xb8] sm:$0xff] %v580
    %726 = vst [vmem:[#allocation8 + $0xc0] sm:$0xff] %v584
    %727 = vst [vmem:[#allocation8 + $0xc8] sm:$0xff] %v586
    %728 = vst [vmem:[#allocation8 + $0xd0] sm:$0xff] %v590
    %729 = vst [vmem:[#allocation8 + $0xd8] sm:$0xff] %v592
    %730 = vst [vmem:[#allocation8 + $0xe0] sm:$0xff] %v596
    %731 = vst [vmem:[#allocation8 + $0xe8] sm:$0xff] %v598
    %732 = vst [vmem:[#allocation8 + $0xf0] sm:$0xff] %v602
    %733 = vst [vmem:[#allocation8 + $0xf8] sm:$0xff] %v604
    %734 = vst [vmem:[#allocation8 + $0x100] sm:$0xff] %v608
    %735 = vst [vmem:[#allocation8 + $0x108] sm:$0xff] %v610
    %736 = vst [vmem:[#allocation8 + $0x110] sm:$0xff] %v614
    %737 = vst [vmem:[#allocation8 + $0x118] sm:$0xff] %v616
    %738 = vst [vmem:[#allocation8 + $0x120] sm:$0xff] %v620
    %739 = vst [vmem:[#allocation8 + $0x128] sm:$0xff] %v622
    %740 = vst [vmem:[#allocation8 + $0x130] sm:$0xff] %v626
    %741 = vst [vmem:[#allocation8 + $0x138] sm:$0xff] %v628
    %742 = vst [vmem:[#allocation8 + $0x140] sm:$0xff] %v632
    %743 = vst [vmem:[#allocation8 + $0x148] sm:$0xff] %v634
    %744 = vst [vmem:[#allocation8 + $0x150] sm:$0xff] %v638
    %745 = vst [vmem:[#allocation8 + $0x158] sm:$0xff] %v640
    %746 = vst [vmem:[#allocation8 + $0x160] sm:$0xff] %v644
    %747 = vst [vmem:[#allocation8 + $0x168] sm:$0xff] %v646
    %748 = vst [vmem:[#allocation8 + $0x170] sm:$0xff] %v650
    %749 = vst [vmem:[#allocation8 + $0x178] sm:$0xff] %v652
    %750 = vst [vmem:[#allocation8 + $0x180] sm:$0xff] %v656
    %751 = vst [vmem:[#allocation8 + $0x188] sm:$0xff] %v658
    %752 = vst [vmem:[#allocation8 + $0x190] sm:$0xff] %v662
    %753 = vst [vmem:[#allocation8 + $0x198] sm:$0xff] %v664
    %754 = vst [vmem:[#allocation8 + $0x1a0] sm:$0xff] %v668
    %755 = vst [vmem:[#allocation8 + $0x1a8] sm:$0xff] %v670
    %756 = vst [vmem:[#allocation8 + $0x1b0] sm:$0xff] %v674
    %757 = vst [vmem:[#allocation8 + $0x1b8] sm:$0xff] %v676
    %758 = vst [vmem:[#allocation8 + $0x1c0] sm:$0xff] %v680
    %759 = vst [vmem:[#allocation8 + $0x1c8] sm:$0xff] %v682
    %760 = vst [vmem:[#allocation8 + $0x1d0] sm:$0xff] %v686
    %761 = vst [vmem:[#allocation8 + $0x1d8] sm:$0xff] %v688
    %762 = vst [vmem:[#allocation8 + $0x1e0] sm:$0xff] %v692
    %763 = vst [vmem:[#allocation8 + $0x1e8] sm:$0xff] %v694
    %764 = vst [vmem:[#allocation8 + $0x1f0] sm:$0xff] %v698
    %765 = vst [vmem:[#allocation8 + $0x1f8] sm:$0xff] %v700
    // Predicated region
    $region26: #{tpu_custom_call.1} parent=1 // pred_check
      _
    $region27: #{tpu_custom_call.1} parent=1 // pred_check_branch
      %767 = sbr.rel (0) target = $region29
    $region28: #{tpu_custom_call.1} parent=1 // pred_region
      %s769 = ssub.s32 8192, 8192
      %770 = vsyncadd [#allocation5], %s769
      %s771 = sshll.u32 [#allocation8], 4
      %s772 = int_to_ptr.vmem [resolvable:$true] %s771
      %777 = dma.vmem_to_hbm [thread:$0]  %s772, 8192, %s3, [#allocation5], 256, 256, 16
    $region29: #{tpu_custom_call.1} parent=1 // pred_fallthru
      _
    // Predicated region
    $region30: #{tpu_custom_call.1} parent=1 // pred_check
      _
    $region31: #{tpu_custom_call.1} parent=1 // pred_check_branch
      %779 = sbr.rel (0) target = $region33
    $region32: #{tpu_custom_call.1} parent=1 // pred_region
      %780 = dma.done [#allocation5], 8192
    $region33: #{tpu_custom_call.1} parent=1 // pred_fallthru
      _
    %781 = vsyncpa [#allocation4], 1
    %782 = vsyncpa [#allocation7], 1
    %783 = vsyncpa [#allocation5], 1

</llo_original>
